<compile_context>
chip_gen: v6e
topology: v6e:2x2x1
jax: 0.10.0
libtpu: 0.0.40
codegen_flags: <defaults>
</compile_context>

<pallas_src>
import functools

import jax
import jax.numpy as jnp
from jax.experimental import pallas as pl
from jax.experimental.pallas import tpu as pltpu

_SUBLANE = 8
_SLAB_TARGET_BYTES = 512 * 1024      # bound on in-kernel f32 temporaries


def _cdiv(a, b):
    return -(-a // b)


def _round_up(x, m):
    return _cdiv(x, m) * m


def _squeeze_image(x):
    # torch .squeeze() drops all size-1 dims; for the (1, 1, H, W) single-image
    # layout this yields (H, W). Be explicit about which axes we drop so a
    # spatial dim of size 1 is never accidentally removed.
    if x.ndim == 2:
        return x
    lead = tuple(range(x.ndim - 2))
    assert all(x.shape[a] == 1 for a in lead), x.shape
    return jnp.squeeze(x, axis=lead)


@functools.lru_cache(maxsize=None)
def _tpu_defaults():
    """Returns (per-core VMEM capacity bytes, tensorcores per chip)."""
    kind = ""
    try:
        kind = jax.devices()[0].device_kind.lower()
    except Exception:
        pass
    is_v7 = ("v7" in kind) or ("7x" in kind)

    vmem_cap = None
    try:
        vmem_cap = getattr(pltpu.get_tpu_info(), "vmem_capacity_bytes", None)
    except Exception:
        vmem_cap = None
    if not vmem_cap:
        vmem_cap = (64 if is_v7 else 128) * 1024 * 1024

    num_tc = 2 if is_v7 else 1       # megacore split only pays off on v7x
    return int(vmem_cap), num_tc


def _make_sse_kernel(H, W, tile_h, slab_h, needs_mask):
    """Builds the streaming SSE kernel for fixed static sizes."""
    n_slabs = tile_h // slab_h

    def kernel(a_ref, b_ref, out_ref):
        i = pl.program_id(1)

        @pl.when(i == 0)
        def _init():
            out_ref[...] = jnp.zeros_like(out_ref)

        # Logical (unclamped) first row of this block; used only for masking.
        row0 = (pl.program_id(0) * pl.num_programs(1) + i) * tile_h

        def slab_update(s, carry):
            off = pl.multiple_of(s * slab_h, slab_h)
            a = a_ref[pl.ds(off, slab_h), :].astype(jnp.float32)
            b = b_ref[pl.ds(off, slab_h), :].astype(jnp.float32)
            d = a - b
            if needs_mask:
                rows = row0 + off + jax.lax.broadcasted_iota(
                    jnp.int32, (slab_h, W), 0)
                d = jnp.where(rows < H, d, 0.0)
            sq = d * d
            # Fold 8-row groups onto the 8-sublane accumulator slab. The
            # reshape splits the sublane axis on its natural tiling boundary,
            # and the leading-axis sum lowers to elementwise vreg adds (VPU
            # only) — no XLU work in the steady state.
            folded = jnp.sum(sq.reshape(slab_h // _SUBLANE, _SUBLANE, W), axis=0)
            out_ref[...] += folded[None, :, :]
            return carry

        jax.lax.fori_loop(0, n_slabs, slab_update, 0)

    return kernel


def appearance_loss(img_render, img_ref, *, num_splits=None,
                    target_tile_bytes=None, vmem_limit_bytes=None,
                    min_pallas_elems=1 << 20):
    """Pallas implementation of AppearanceLoss.forward.

    Args:
      img_render: (1, 1, H, W) float array (projected-points image).
      img_ref:    (1, 1, H, W) float array (binarized reference silhouette).

    Returns:
      (dist, img_render_binary): scalar f32 SSE and the squeezed render image.
    """
    render2d = _squeeze_image(img_render)
    ref2d = _squeeze_image(img_ref)
    assert render2d.shape == ref2d.shape, (render2d.shape, ref2d.shape)
    H, W = render2d.shape
    img_render_binary = render2d      # torch returns the squeezed render unchanged

    itemsize = jnp.dtype(render2d.dtype).itemsize
    # Packed-sublane granularity: 8 rows for f32, 16 for bf16, 32 for int8/fp8.
    sub_mult = max(_SUBLANE, 32 // itemsize)

    # Small images: pallas_call launch / pipeline overhead exceeds the HBM time
    # (a 512x640 f32 pair is ~2.6 MB ~= 2 us of traffic on v6e); XLA's fused
    # subtract-square-reduce is already at the roofline there.
    if H * W < min_pallas_elems or H < sub_mult:
        d = render2d.astype(jnp.float32) - ref2d.astype(jnp.float32)
        return jnp.sum(d * d), img_render_binary

    # ---- generation-aware sizing -------------------------------------------
    vmem_cap, num_tc = _tpu_defaults()
    if vmem_limit_bytes is None:
        # 64 MiB on v5e/v6e (128 MiB physical), 32 MiB on v7x (64 MiB physical).
        vmem_limit_bytes = min(vmem_cap // 2, 64 * 1024 * 1024)
    if target_tile_bytes is None:
        # 2 inputs x 2 pipeline buffers x tile + slab temporaries must fit.
        target_tile_bytes = max(1 << 20,
                                min(vmem_limit_bytes // 4 - (2 << 20), 12 << 20))
    if num_splits is None:
        num_splits = num_tc           # 2 TensorCores on v7x, 1 on v5e/v6e

    # ---- tile selection ------------------------------------------------------
    row_bytes = W * itemsize
    rows_target = max(sub_mult,
                      (target_tile_bytes // row_bytes) // sub_mult * sub_mult)
    tile_h = min(rows_target, _round_up(_cdiv(H, num_splits), sub_mult))

    # In-kernel slab: bounds f32 temporaries to ~_SLAB_TARGET_BYTES regardless
    # of tile size (multiple of sub_mult, hence of 8, for the accumulator fold).
    slab_h = max(sub_mult,
                 min(tile_h, (_SLAB_TARGET_BYTES // (W * 4)) // sub_mult * sub_mult))
    tile_h = max(slab_h, tile_h // slab_h * slab_h)    # tile_h % slab_h == 0

    n_blocks = _cdiv(H, tile_h)                 # row blocks that actually exist
    num_splits = max(1, min(num_splits, n_blocks))
    steps = _cdiv(_cdiv(H, num_splits), tile_h)
    total_blocks = num_splits * steps           # grid coverage (may overshoot H)
    needs_mask = total_blocks * tile_h > H

    if total_blocks > n_blocks:
        # Overshooting grid steps re-read the last real block (the clamp keeps
        # every DMA in bounds); their logical rows are >= H so the in-kernel
        # mask zeroes their contribution.
        def in_index(c, i):
            return (jnp.minimum(c * steps + i, n_blocks - 1), 0)
    else:
        def in_index(c, i):
            return (c * steps + i, 0)

    in_spec = pl.BlockSpec((tile_h, W), in_index)
    kernel = _make_sse_kernel(H, W, tile_h, slab_h, needs_mask)

    partials = pl.pallas_call(
        kernel,
        out_shape=jax.ShapeDtypeStruct((num_splits, _SUBLANE, W), jnp.float32),
        grid_spec=pltpu.PrefetchScalarGridSpec(
            num_scalar_prefetch=0,
            grid=(num_splits, steps),
            in_specs=[in_spec, in_spec],
            out_specs=pl.BlockSpec((1, _SUBLANE, W), lambda c, i: (c, 0, 0)),
        ),
        compiler_params=pltpu.CompilerParams(
            # leading axis: row split across TensorCores; trailing: reduction.
            dimension_semantics=("parallel", "arbitrary"),
            vmem_limit_bytes=int(vmem_limit_bytes),
        ),
        cost_estimate=pl.CostEstimate(
            flops=3 * H * W,
            transcendentals=0,
            bytes_accessed=2 * H * W * itemsize + num_splits * _SUBLANE * W * 4,
        ),
    )(render2d, ref2d)

    # Single tiny cross-lane / cross-core reduce outside the hot loop.
    dist = jnp.sum(partials)
    return dist, img_render_binary


if __name__ == "__main__":
    key = jax.random.PRNGKey(0)

    def make_inputs(k, H, W):
        k1, k2 = jax.random.split(k)
        img_render = jax.random.uniform(k1, (1, 1, H, W), dtype=jnp.float32)
        img_ref = (jax.random.uniform(k2, (1, 1, H, W)) > 0.5).astype(jnp.float32)
        return img_render, img_ref

    def check(result, img_render, img_ref):
        dist, render_bin = result
        dist = jax.block_until_ready(dist)
        render_bin = jax.block_until_ready(render_bin)
        r2 = jnp.squeeze(img_render, axis=(0, 1))
        f2 = jnp.squeeze(img_ref, axis=(0, 1))
        ref_dist = jnp.sum((r2 - f2) ** 2)
        assert float(dist) >= 0.0
        assert render_bin.shape == r2.shape
        assert jnp.allclose(render_bin, r2)
        assert jnp.allclose(dist, ref_dist, rtol=1e-4, atol=1e-2), (dist, ref_dist)

    k1, k2, k3 = jax.random.split(key, 3)

    # 1) Pallas path: aligned small shape, default (generation-aware) tiling.
    ir, rf = make_inputs(k1, 256, 384)
    check(appearance_loss(ir, rf, min_pallas_elems=0), ir, rf)

    # 2) Pallas path: unaligned shape + forced 2-way core split + multi-step
    #    reduction -> exercises in-kernel row masking and block-index clamping
    #    (no jnp.pad anywhere).
    ir, rf = make_inputs(k2, 300, 200)
    check(appearance_loss(ir, rf, num_splits=2, target_tile_bytes=96 * 1024,
                          min_pallas_elems=0), ir, rf)

    # 3) Small image -> plain-JAX fallback (launch overhead would dominate).
    ir, rf = make_inputs(k3, 128, 256)
    check(appearance_loss(ir, rf), ir, rf)

    print("KERNEL_OK")
</pallas_src>

<mosaic_0001>
module attributes {stable_mosaic.version = 11 : i64} {
  func.func @kernel(%arg0: i32, %arg1: i32, %arg2: memref<256x384xf32, #tpu.memory_space<vmem>>, %arg3: memref<256x384xf32, #tpu.memory_space<vmem>>, %arg4: memref<1x8x384xf32, #tpu.memory_space<vmem>>) attributes {dimension_semantics = [#tpu.dimension_semantics<parallel>, #tpu.dimension_semantics<arbitrary>], iteration_bounds = array<i64: 1, 1>, scalar_prefetch = 0 : i64, scratch_operands = 0 : i64, tpu.core_type = #tpu.core_type<tc>, window_params = [{transform_indices = @transform_0, window_bounds = array<i64: 256, 384>}, {transform_indices = @transform_1, window_bounds = array<i64: 256, 384>}, {transform_indices = @transform_2, window_bounds = array<i64: 1, 8, 384>}]} {
    %c0_i32 = arith.constant 0 : i32
    %0 = arith.cmpi eq, %arg1, %c0_i32 : i32
    %1 = arith.extui %0 : i1 to i32
    %c0_i32_0 = arith.constant 0 : i32
    %2 = arith.cmpi ne, %1, %c0_i32_0 : i32
    scf.if %2 {
      %cst_9 = arith.constant 0.000000e+00 : f32
      %17 = vector.broadcast %cst_9 : f32 to vector<1x8x384xf32>
      %c0_10 = arith.constant 0 : index
      %c0_11 = arith.constant 0 : index
      %c0_12 = arith.constant 0 : index
      %18 = vector.load %arg4[%c0_10, %c0_11, %c0_12] : memref<1x8x384xf32, #tpu.memory_space<vmem>>, vector<1x8x384xf32>
      tpu.vector_store %arg4[%c0_10, %c0_11, %c0_12], %17 {strides = array<i32>} : memref<1x8x384xf32, #tpu.memory_space<vmem>>, vector<1x8x384xf32>,
    } else {
    }
    %c0_i32_1 = arith.constant 0 : i32
    %c256_i32 = arith.constant 256 : i32
    %3 = arith.muli %c0_i32_1, %c256_i32 : i32
    %4 = tpu.assume_multiple %3, 256 : i32
    %5 = arith.index_cast %4 : i32 to index
    %c0 = arith.constant 0 : index
    %6 = vector.load %arg2[%5, %c0] : memref<256x384xf32, #tpu.memory_space<vmem>>, vector<256x384xf32>
    %7 = arith.index_cast %4 : i32 to index
    %c0_2 = arith.constant 0 : index
    %8 = vector.load %arg3[%7, %c0_2] : memref<256x384xf32, #tpu.memory_space<vmem>>, vector<256x384xf32>
    %9 = arith.subf %6, %8 : vector<256x384xf32>
    %10 = arith.mulf %9, %9 : vector<256x384xf32>
    %11 = vector.shape_cast %10 : vector<256x384xf32> to vector<32x8x384xf32>
    %cst = arith.constant dense<0.000000e+00> : vector<8x384xf32>
    %12 = vector.multi_reduction <add>, %11, %cst [0] : vector<32x8x384xf32> to vector<8x384xf32>
    %c0_3 = arith.constant 0 : index
    %c0_4 = arith.constant 0 : index
    %c0_5 = arith.constant 0 : index
    %13 = vector.load %arg4[%c0_3, %c0_4, %c0_5] : memref<1x8x384xf32, #tpu.memory_space<vmem>>, vector<1x8x384xf32>
    %14 = vector.shape_cast %12 : vector<8x384xf32> to vector<1x8x384xf32>
    %15 = arith.addf %13, %14 : vector<1x8x384xf32>
    %c0_6 = arith.constant 0 : index
    %c0_7 = arith.constant 0 : index
    %c0_8 = arith.constant 0 : index
    %16 = vector.load %arg4[%c0_6, %c0_7, %c0_8] : memref<1x8x384xf32, #tpu.memory_space<vmem>>, vector<1x8x384xf32>
    tpu.vector_store %arg4[%c0_6, %c0_7, %c0_8], %15 {strides = array<i32>} : memref<1x8x384xf32, #tpu.memory_space<vmem>>, vector<1x8x384xf32>,
    %c1_i32 = arith.constant 1 : i32
    return
  }
  func.func @transform_0(%arg0: i32, %arg1: i32) -> (i32, i32) {
    %c1_i32 = arith.constant 1 : i32
    %0 = arith.muli %arg0, %c1_i32 : i32
    %1 = arith.addi %0, %arg1 : i32
    %c0_i32 = arith.constant 0 : i32
    %c0_i32_0 = arith.constant 0 : i32
    return %1, %c0_i32 : i32, i32
  }
  func.func @transform_1(%arg0: i32, %arg1: i32) -> (i32, i32) {
    %c1_i32 = arith.constant 1 : i32
    %0 = arith.muli %arg0, %c1_i32 : i32
    %1 = arith.addi %0, %arg1 : i32
    %c0_i32 = arith.constant 0 : i32
    %c0_i32_0 = arith.constant 0 : i32
    return %1, %c0_i32 : i32, i32
  }
  func.func @transform_2(%arg0: i32, %arg1: i32) -> (i32, i32, i32) {
    %c0_i32 = arith.constant 0 : i32
    %c0_i32_0 = arith.constant 0 : i32
    %c0_i32_1 = arith.constant 0 : i32
    return %arg0, %c0_i32, %c0_i32_0 : i32, i32, i32
  }
}

</mosaic_0001>

<llo_original>
// kernel: tpu_custom_call.1
$region0: #{tpu_custom_call.1}
  #allocation0 [shape = 'u32[]', space=smem, size = 0x4, offset = 0x4, fixed_abs, tag = 'smem constant byte address 0x4 - core index']
  #allocation1 [shape = 'u32[144,128]{1,0:T(1,128)}', space=vmem, size = 0x12000, scoped, tag = 'internal scratch']
  %s0 = inlined_call_operand.hbm [shape: f32[256,384], index: 0, kind: input, shape index: {}]
  %s1 = inlined_call_operand.hbm [shape: f32[256,384], index: 1, kind: input, shape index: {}]
  %s2 = inlined_call_operand.hbm [shape: f32[1,8,384], index: 2, kind: output, shape index: {}]
  %s3 = sld [smem:[#allocation0]]
  $region30: #{tpu_custom_call.1} parent=0
    _
  %s5 = ssub.s32 1, %s3
  %s6 = scalar_select 0, %s5, %s3
  $region1: #{tpu_custom_call.1} parent=0
    #allocation2 [shape = 'u8[393216]{0}', space=vmem, size = 0x60000, scoped, tag = 'input window, operand 0, single buffered']
    #allocation3 [shape = 's32[1]{0}', space=sflag, size = 0x4, scoped, tag = 'scoped memory for tpu_custom_call.1']
    #allocation4 [shape = 's32[1]{0}', space=sflag, size = 0x4, scoped, tag = 'scoped memory for tpu_custom_call.1']
    #allocation5 [shape = 'u8[393216]{0}', space=vmem, size = 0x60000, scoped, tag = 'input window, operand 1, single buffered']
    #allocation6 [shape = 's32[1]{0}', space=sflag, size = 0x4, scoped, tag = 'scoped memory for tpu_custom_call.1']
    #allocation7 [shape = 'u8[12288]{0}', space=vmem, size = 0x3000, scoped, tag = 'output window, operand 0, single buffered']
    %7 = vsyncpa [#allocation3], 0
    %8 = vsyncpa [#allocation6], 0
    %9 = vsyncpa [#allocation4], 0
    // Predicated region
    $region2: #{tpu_custom_call.1} parent=1 // pred_check
      _
    $region3: #{tpu_custom_call.1} parent=1 // pred_check_branch
      %11 = sbr.rel (0) target = $region5
    $region4: #{tpu_custom_call.1} parent=1 // pred_region
      %s12 = sadd.s32 0, 0
      %s13 = smul.u32 32, %s12
      %s15 = ssub.s32 12288, 12288
      %16 = vsyncadd [#allocation3], %s15
      %s17 = smul.addr %s13, 3
      %s18 = smul.addr %s17, 128
      %s19 = scalar_lea.hbm %s0, %s18
      %s20 = sshll.u32 [#allocation2], 4
      %s21 = int_to_ptr.vmem [resolvable:$true] %s20
      %26 = dma.hbm_to_vmem [thread:$0]  %s19, 12288, %s21, [#allocation3], 384, 384, 24
    $region5: #{tpu_custom_call.1} parent=1 // pred_fallthru
      _
    // Predicated region
    $region6: #{tpu_custom_call.1} parent=1 // pred_check
      _
    $region7: #{tpu_custom_call.1} parent=1 // pred_check_branch
      %28 = sbr.rel (0) target = $region9
    $region8: #{tpu_custom_call.1} parent=1 // pred_region
      %s29 = sadd.s32 0, 0
      %s30 = smul.u32 32, %s29
      %s32 = ssub.s32 12288, 12288
      %33 = vsyncadd [#allocation6], %s32
      %s34 = smul.addr %s30, 3
      %s35 = smul.addr %s34, 128
      %s36 = scalar_lea.hbm %s1, %s35
      %s37 = sshll.u32 [#allocation5], 4
      %s38 = int_to_ptr.vmem [resolvable:$true] %s37
      %43 = dma.hbm_to_vmem [thread:$0]  %s36, 12288, %s38, [#allocation6], 384, 384, 24
    $region9: #{tpu_custom_call.1} parent=1 // pred_fallthru
      _
    // Predicated region
    $region10: #{tpu_custom_call.1} parent=1 // pred_check
      _
    $region11: #{tpu_custom_call.1} parent=1 // pred_check_branch
      %45 = sbr.rel (0) target = $region13
    $region12: #{tpu_custom_call.1} parent=1 // pred_region
      %46 = dma.done [#allocation3], 12288
    $region13: #{tpu_custom_call.1} parent=1 // pred_fallthru
      _
    // Predicated region
    $region14: #{tpu_custom_call.1} parent=1 // pred_check
      _
    $region15: #{tpu_custom_call.1} parent=1 // pred_check_branch
      %48 = sbr.rel (0) target = $region17
    $region16: #{tpu_custom_call.1} parent=1 // pred_region
      %49 = dma.done [#allocation6], 12288
    $region17: #{tpu_custom_call.1} parent=1 // pred_fallthru
      _
    %s50 = sadd.s32 0, 0
    %s51 = smul.u32 32, %s50
    %s52 = sadd.s32 0, 0
    %s53 = smul.u32 32, %s52
    %p54 = scmp.eq.s32.totalorder 0, 0
    // Predicated region
    $region18: #{tpu_custom_call.1} parent=1 // pred_check
      %p55 = pneg %p54
    $region19: #{tpu_custom_call.1} parent=1 // pred_check_branch
      %57 = sbr.rel (%p55) target = $region21
    $region20: #{tpu_custom_call.1} parent=1 // pred_region
      %58 = vst [vmem:[#allocation7] sm:$0xff] 0.0
      %59 = vst [vmem:[#allocation7 + $0x8] sm:$0xff] 0.0
      %60 = vst [vmem:[#allocation7 + $0x10] sm:$0xff] 0.0
    $region21: #{tpu_custom_call.1} parent=1 // pred_fallthru
      _
    %s61 = smul.u32 0, 3
    %s62 = smul.addr %s61, 8
    %s63 = scalar_lea.vmem [#allocation2], %s62
    %v64 = vld [vmem:[%s63] sm:$0xff]
    %v65 = vld [vmem:[%s63 + $0x8] sm:$0xff]
    %v66 = vld [vmem:[%s63 + $0x10] sm:$0xff]
    %v67 = vld [vmem:[%s63 + $0x18] sm:$0xff]
    %v68 = vld [vmem:[%s63 + $0x20] sm:$0xff]
    %v69 = vld [vmem:[%s63 + $0x28] sm:$0xff]
    %v70 = vld [vmem:[%s63 + $0x30] sm:$0xff]
    %v71 = vld [vmem:[%s63 + $0x38] sm:$0xff]
    %v72 = vld [vmem:[%s63 + $0x40] sm:$0xff]
    %v73 = vld [vmem:[%s63 + $0x48] sm:$0xff]
    %v74 = vld [vmem:[%s63 + $0x50] sm:$0xff]
    %v75 = vld [vmem:[%s63 + $0x58] sm:$0xff]
    %v76 = vld [vmem:[%s63 + $0x60] sm:$0xff]
    %v77 = vld [vmem:[%s63 + $0x68] sm:$0xff]
    %v78 = vld [vmem:[%s63 + $0x70] sm:$0xff]
    %v79 = vld [vmem:[%s63 + $0x78] sm:$0xff]
    %v80 = vld [vmem:[%s63 + $0x80] sm:$0xff]
    %v81 = vld [vmem:[%s63 + $0x88] sm:$0xff]
    %v82 = vld [vmem:[%s63 + $0x90] sm:$0xff]
    %v83 = vld [vmem:[%s63 + $0x98] sm:$0xff]
    %v84 = vld [vmem:[%s63 + $0xa0] sm:$0xff]
    %v85 = vld [vmem:[%s63 + $0xa8] sm:$0xff]
    %v86 = vld [vmem:[%s63 + $0xb0] sm:$0xff]
    %v87 = vld [vmem:[%s63 + $0xb8] sm:$0xff]
    %v88 = vld [vmem:[%s63 + $0xc0] sm:$0xff]
    %v89 = vld [vmem:[%s63 + $0xc8] sm:$0xff]
    %v90 = vld [vmem:[%s63 + $0xd0] sm:$0xff]
    %v91 = vld [vmem:[%s63 + $0xd8] sm:$0xff]
    %v92 = vld [vmem:[%s63 + $0xe0] sm:$0xff]
    %v93 = vld [vmem:[%s63 + $0xe8] sm:$0xff]
    %v94 = vld [vmem:[%s63 + $0xf0] sm:$0xff]
    %v95 = vld [vmem:[%s63 + $0xf8] sm:$0xff]
    %v96 = vld [vmem:[%s63 + $0x100] sm:$0xff]
    %v97 = vld [vmem:[%s63 + $0x108] sm:$0xff]
    %v98 = vld [vmem:[%s63 + $0x110] sm:$0xff]
    %v99 = vld [vmem:[%s63 + $0x118] sm:$0xff]
    %v100 = vld [vmem:[%s63 + $0x120] sm:$0xff]
    %v101 = vld [vmem:[%s63 + $0x128] sm:$0xff]
    %v102 = vld [vmem:[%s63 + $0x130] sm:$0xff]
    %v103 = vld [vmem:[%s63 + $0x138] sm:$0xff]
    %v104 = vld [vmem:[%s63 + $0x140] sm:$0xff]
    %v105 = vld [vmem:[%s63 + $0x148] sm:$0xff]
    %v106 = vld [vmem:[%s63 + $0x150] sm:$0xff]
    %v107 = vld [vmem:[%s63 + $0x158] sm:$0xff]
    %v108 = vld [vmem:[%s63 + $0x160] sm:$0xff]
    %v109 = vld [vmem:[%s63 + $0x168] sm:$0xff]
    %v110 = vld [vmem:[%s63 + $0x170] sm:$0xff]
    %v111 = vld [vmem:[%s63 + $0x178] sm:$0xff]
    %v112 = vld [vmem:[%s63 + $0x180] sm:$0xff]
    %v113 = vld [vmem:[%s63 + $0x188] sm:$0xff]
    %v114 = vld [vmem:[%s63 + $0x190] sm:$0xff]
    %v115 = vld [vmem:[%s63 + $0x198] sm:$0xff]
    %v116 = vld [vmem:[%s63 + $0x1a0] sm:$0xff]
    %v117 = vld [vmem:[%s63 + $0x1a8] sm:$0xff]
    %v118 = vld [vmem:[%s63 + $0x1b0] sm:$0xff]
    %v119 = vld [vmem:[%s63 + $0x1b8] sm:$0xff]
    %v120 = vld [vmem:[%s63 + $0x1c0] sm:$0xff]
    %v121 = vld [vmem:[%s63 + $0x1c8] sm:$0xff]
    %v122 = vld [vmem:[%s63 + $0x1d0] sm:$0xff]
    %v123 = vld [vmem:[%s63 + $0x1d8] sm:$0xff]
    %v124 = vld [vmem:[%s63 + $0x1e0] sm:$0xff]
    %v125 = vld [vmem:[%s63 + $0x1e8] sm:$0xff]
    %v126 = vld [vmem:[%s63 + $0x1f0] sm:$0xff]
    %v127 = vld [vmem:[%s63 + $0x1f8] sm:$0xff]
    %v128 = vld [vmem:[%s63 + $0x200] sm:$0xff]
    %v129 = vld [vmem:[%s63 + $0x208] sm:$0xff]
    %v130 = vld [vmem:[%s63 + $0x210] sm:$0xff]
    %v131 = vld [vmem:[%s63 + $0x218] sm:$0xff]
    %v132 = vld [vmem:[%s63 + $0x220] sm:$0xff]
    %v133 = vld [vmem:[%s63 + $0x228] sm:$0xff]
    %v134 = vld [vmem:[%s63 + $0x230] sm:$0xff]
    %v135 = vld [vmem:[%s63 + $0x238] sm:$0xff]
    %v136 = vld [vmem:[%s63 + $0x240] sm:$0xff]
    %v137 = vld [vmem:[%s63 + $0x248] sm:$0xff]
    %v138 = vld [vmem:[%s63 + $0x250] sm:$0xff]
    %v139 = vld [vmem:[%s63 + $0x258] sm:$0xff]
    %v140 = vld [vmem:[%s63 + $0x260] sm:$0xff]
    %v141 = vld [vmem:[%s63 + $0x268] sm:$0xff]
    %v142 = vld [vmem:[%s63 + $0x270] sm:$0xff]
    %v143 = vld [vmem:[%s63 + $0x278] sm:$0xff]
    %v144 = vld [vmem:[%s63 + $0x280] sm:$0xff]
    %v145 = vld [vmem:[%s63 + $0x288] sm:$0xff]
    %v146 = vld [vmem:[%s63 + $0x290] sm:$0xff]
    %v147 = vld [vmem:[%s63 + $0x298] sm:$0xff]
    %v148 = vld [vmem:[%s63 + $0x2a0] sm:$0xff]
    %v149 = vld [vmem:[%s63 + $0x2a8] sm:$0xff]
    %v150 = vld [vmem:[%s63 + $0x2b0] sm:$0xff]
    %v151 = vld [vmem:[%s63 + $0x2b8] sm:$0xff]
    %v152 = vld [vmem:[%s63 + $0x2c0] sm:$0xff]
    %v153 = vld [vmem:[%s63 + $0x2c8] sm:$0xff]
    %v154 = vld [vmem:[%s63 + $0x2d0] sm:$0xff]
    %v155 = vld [vmem:[%s63 + $0x2d8] sm:$0xff]
    %v156 = vld [vmem:[%s63 + $0x2e0] sm:$0xff]
    %v157 = vld [vmem:[%s63 + $0x2e8] sm:$0xff]
    %v158 = vld [vmem:[%s63 + $0x2f0] sm:$0xff]
    %v159 = vld [vmem:[%s63 + $0x2f8] sm:$0xff]
    %s160 = smul.addr %s61, 8
    %s161 = scalar_lea.vmem [#allocation5], %s160
    %v162 = vld [vmem:[%s161] sm:$0xff]
    %v163 = vld [vmem:[%s161 + $0x8] sm:$0xff]
    %v164 = vld [vmem:[%s161 + $0x10] sm:$0xff]
    %v165 = vld [vmem:[%s161 + $0x18] sm:$0xff]
    %v166 = vld [vmem:[%s161 + $0x20] sm:$0xff]
    %v167 = vld [vmem:[%s161 + $0x28] sm:$0xff]
    %v168 = vld [vmem:[%s161 + $0x30] sm:$0xff]
    %v169 = vld [vmem:[%s161 + $0x38] sm:$0xff]
    %v170 = vld [vmem:[%s161 + $0x40] sm:$0xff]
    %v171 = vld [vmem:[%s161 + $0x48] sm:$0xff]
    %v172 = vld [vmem:[%s161 + $0x50] sm:$0xff]
    %v173 = vld [vmem:[%s161 + $0x58] sm:$0xff]
    %v174 = vld [vmem:[%s161 + $0x60] sm:$0xff]
    %v175 = vld [vmem:[%s161 + $0x68] sm:$0xff]
    %v176 = vld [vmem:[%s161 + $0x70] sm:$0xff]
    %v177 = vld [vmem:[%s161 + $0x78] sm:$0xff]
    %v178 = vld [vmem:[%s161 + $0x80] sm:$0xff]
    %v179 = vld [vmem:[%s161 + $0x88] sm:$0xff]
    %v180 = vld [vmem:[%s161 + $0x90] sm:$0xff]
    %v181 = vld [vmem:[%s161 + $0x98] sm:$0xff]
    %v182 = vld [vmem:[%s161 + $0xa0] sm:$0xff]
    %v183 = vld [vmem:[%s161 + $0xa8] sm:$0xff]
    %v184 = vld [vmem:[%s161 + $0xb0] sm:$0xff]
    %v185 = vld [vmem:[%s161 + $0xb8] sm:$0xff]
    %v186 = vld [vmem:[%s161 + $0xc0] sm:$0xff]
    %v187 = vld [vmem:[%s161 + $0xc8] sm:$0xff]
    %v188 = vld [vmem:[%s161 + $0xd0] sm:$0xff]
    %v189 = vld [vmem:[%s161 + $0xd8] sm:$0xff]
    %v190 = vld [vmem:[%s161 + $0xe0] sm:$0xff]
    %v191 = vld [vmem:[%s161 + $0xe8] sm:$0xff]
    %v192 = vld [vmem:[%s161 + $0xf0] sm:$0xff]
    %v193 = vld [vmem:[%s161 + $0xf8] sm:$0xff]
    %v194 = vld [vmem:[%s161 + $0x100] sm:$0xff]
    %v195 = vld [vmem:[%s161 + $0x108] sm:$0xff]
    %v196 = vld [vmem:[%s161 + $0x110] sm:$0xff]
    %v197 = vld [vmem:[%s161 + $0x118] sm:$0xff]
    %v198 = vld [vmem:[%s161 + $0x120] sm:$0xff]
    %v199 = vld [vmem:[%s161 + $0x128] sm:$0xff]
    %v200 = vld [vmem:[%s161 + $0x130] sm:$0xff]
    %v201 = vld [vmem:[%s161 + $0x138] sm:$0xff]
    %v202 = vld [vmem:[%s161 + $0x140] sm:$0xff]
    %v203 = vld [vmem:[%s161 + $0x148] sm:$0xff]
    %v204 = vld [vmem:[%s161 + $0x150] sm:$0xff]
    %v205 = vld [vmem:[%s161 + $0x158] sm:$0xff]
    %v206 = vld [vmem:[%s161 + $0x160] sm:$0xff]
    %v207 = vld [vmem:[%s161 + $0x168] sm:$0xff]
    %v208 = vld [vmem:[%s161 + $0x170] sm:$0xff]
    %v209 = vld [vmem:[%s161 + $0x178] sm:$0xff]
    %v210 = vld [vmem:[%s161 + $0x180] sm:$0xff]
    %v211 = vld [vmem:[%s161 + $0x188] sm:$0xff]
    %v212 = vld [vmem:[%s161 + $0x190] sm:$0xff]
    %v213 = vld [vmem:[%s161 + $0x198] sm:$0xff]
    %v214 = vld [vmem:[%s161 + $0x1a0] sm:$0xff]
    %v215 = vld [vmem:[%s161 + $0x1a8] sm:$0xff]
    %v216 = vld [vmem:[%s161 + $0x1b0] sm:$0xff]
    %v217 = vld [vmem:[%s161 + $0x1b8] sm:$0xff]
    %v218 = vld [vmem:[%s161 + $0x1c0] sm:$0xff]
    %v219 = vld [vmem:[%s161 + $0x1c8] sm:$0xff]
    %v220 = vld [vmem:[%s161 + $0x1d0] sm:$0xff]
    %v221 = vld [vmem:[%s161 + $0x1d8] sm:$0xff]
    %v222 = vld [vmem:[%s161 + $0x1e0] sm:$0xff]
    %v223 = vld [vmem:[%s161 + $0x1e8] sm:$0xff]
    %v224 = vld [vmem:[%s161 + $0x1f0] sm:$0xff]
    %v225 = vld [vmem:[%s161 + $0x1f8] sm:$0xff]
    %v226 = vld [vmem:[%s161 + $0x200] sm:$0xff]
    %v227 = vld [vmem:[%s161 + $0x208] sm:$0xff]
    %v228 = vld [vmem:[%s161 + $0x210] sm:$0xff]
    %v229 = vld [vmem:[%s161 + $0x218] sm:$0xff]
    %v230 = vld [vmem:[%s161 + $0x220] sm:$0xff]
    %v231 = vld [vmem:[%s161 + $0x228] sm:$0xff]
    %v232 = vld [vmem:[%s161 + $0x230] sm:$0xff]
    %v233 = vld [vmem:[%s161 + $0x238] sm:$0xff]
    %v234 = vld [vmem:[%s161 + $0x240] sm:$0xff]
    %v235 = vld [vmem:[%s161 + $0x248] sm:$0xff]
    %v236 = vld [vmem:[%s161 + $0x250] sm:$0xff]
    %v237 = vld [vmem:[%s161 + $0x258] sm:$0xff]
    %v238 = vld [vmem:[%s161 + $0x260] sm:$0xff]
    %v239 = vld [vmem:[%s161 + $0x268] sm:$0xff]
    %v240 = vld [vmem:[%s161 + $0x270] sm:$0xff]
    %v241 = vld [vmem:[%s161 + $0x278] sm:$0xff]
    %v242 = vld [vmem:[%s161 + $0x280] sm:$0xff]
    %v243 = vld [vmem:[%s161 + $0x288] sm:$0xff]
    %v244 = vld [vmem:[%s161 + $0x290] sm:$0xff]
    %v245 = vld [vmem:[%s161 + $0x298] sm:$0xff]
    %v246 = vld [vmem:[%s161 + $0x2a0] sm:$0xff]
    %v247 = vld [vmem:[%s161 + $0x2a8] sm:$0xff]
    %v248 = vld [vmem:[%s161 + $0x2b0] sm:$0xff]
    %v249 = vld [vmem:[%s161 + $0x2b8] sm:$0xff]
    %v250 = vld [vmem:[%s161 + $0x2c0] sm:$0xff]
    %v251 = vld [vmem:[%s161 + $0x2c8] sm:$0xff]
    %v252 = vld [vmem:[%s161 + $0x2d0] sm:$0xff]
    %v253 = vld [vmem:[%s161 + $0x2d8] sm:$0xff]
    %v254 = vld [vmem:[%s161 + $0x2e0] sm:$0xff]
    %v255 = vld [vmem:[%s161 + $0x2e8] sm:$0xff]
    %v256 = vld [vmem:[%s161 + $0x2f0] sm:$0xff]
    %v257 = vld [vmem:[%s161 + $0x2f8] sm:$0xff]
    %v258 = vsub.f32 %v64, %v162
    %v259 = vsub.f32 %v65, %v163
    %v260 = vsub.f32 %v66, %v164
    %v261 = vsub.f32 %v67, %v165
    %v262 = vsub.f32 %v68, %v166
    %v263 = vsub.f32 %v69, %v167
    %v264 = vsub.f32 %v70, %v168
    %v265 = vsub.f32 %v71, %v169
    %v266 = vsub.f32 %v72, %v170
    %v267 = vsub.f32 %v73, %v171
    %v268 = vsub.f32 %v74, %v172
    %v269 = vsub.f32 %v75, %v173
    %v270 = vsub.f32 %v76, %v174
    %v271 = vsub.f32 %v77, %v175
    %v272 = vsub.f32 %v78, %v176
    %v273 = vsub.f32 %v79, %v177
    %v274 = vsub.f32 %v80, %v178
    %v275 = vsub.f32 %v81, %v179
    %v276 = vsub.f32 %v82, %v180
    %v277 = vsub.f32 %v83, %v181
    %v278 = vsub.f32 %v84, %v182
    %v279 = vsub.f32 %v85, %v183
    %v280 = vsub.f32 %v86, %v184
    %v281 = vsub.f32 %v87, %v185
    %v282 = vsub.f32 %v88, %v186
    %v283 = vsub.f32 %v89, %v187
    %v284 = vsub.f32 %v90, %v188
    %v285 = vsub.f32 %v91, %v189
    %v286 = vsub.f32 %v92, %v190
    %v287 = vsub.f32 %v93, %v191
    %v288 = vsub.f32 %v94, %v192
    %v289 = vsub.f32 %v95, %v193
    %v290 = vsub.f32 %v96, %v194
    %v291 = vsub.f32 %v97, %v195
    %v292 = vsub.f32 %v98, %v196
    %v293 = vsub.f32 %v99, %v197
    %v294 = vsub.f32 %v100, %v198
    %v295 = vsub.f32 %v101, %v199
    %v296 = vsub.f32 %v102, %v200
    %v297 = vsub.f32 %v103, %v201
    %v298 = vsub.f32 %v104, %v202
    %v299 = vsub.f32 %v105, %v203
    %v300 = vsub.f32 %v106, %v204
    %v301 = vsub.f32 %v107, %v205
    %v302 = vsub.f32 %v108, %v206
    %v303 = vsub.f32 %v109, %v207
    %v304 = vsub.f32 %v110, %v208
    %v305 = vsub.f32 %v111, %v209
    %v306 = vsub.f32 %v112, %v210
    %v307 = vsub.f32 %v113, %v211
    %v308 = vsub.f32 %v114, %v212
    %v309 = vsub.f32 %v115, %v213
    %v310 = vsub.f32 %v116, %v214
    %v311 = vsub.f32 %v117, %v215
    %v312 = vsub.f32 %v118, %v216
    %v313 = vsub.f32 %v119, %v217
    %v314 = vsub.f32 %v120, %v218
    %v315 = vsub.f32 %v121, %v219
    %v316 = vsub.f32 %v122, %v220
    %v317 = vsub.f32 %v123, %v221
    %v318 = vsub.f32 %v124, %v222
    %v319 = vsub.f32 %v125, %v223
    %v320 = vsub.f32 %v126, %v224
    %v321 = vsub.f32 %v127, %v225
    %v322 = vsub.f32 %v128, %v226
    %v323 = vsub.f32 %v129, %v227
    %v324 = vsub.f32 %v130, %v228
    %v325 = vsub.f32 %v131, %v229
    %v326 = vsub.f32 %v132, %v230
    %v327 = vsub.f32 %v133, %v231
    %v328 = vsub.f32 %v134, %v232
    %v329 = vsub.f32 %v135, %v233
    %v330 = vsub.f32 %v136, %v234
    %v331 = vsub.f32 %v137, %v235
    %v332 = vsub.f32 %v138, %v236
    %v333 = vsub.f32 %v139, %v237
    %v334 = vsub.f32 %v140, %v238
    %v335 = vsub.f32 %v141, %v239
    %v336 = vsub.f32 %v142, %v240
    %v337 = vsub.f32 %v143, %v241
    %v338 = vsub.f32 %v144, %v242
    %v339 = vsub.f32 %v145, %v243
    %v340 = vsub.f32 %v146, %v244
    %v341 = vsub.f32 %v147, %v245
    %v342 = vsub.f32 %v148, %v246
    %v343 = vsub.f32 %v149, %v247
    %v344 = vsub.f32 %v150, %v248
    %v345 = vsub.f32 %v151, %v249
    %v346 = vsub.f32 %v152, %v250
    %v347 = vsub.f32 %v153, %v251
    %v348 = vsub.f32 %v154, %v252
    %v349 = vsub.f32 %v155, %v253
    %v350 = vsub.f32 %v156, %v254
    %v351 = vsub.f32 %v157, %v255
    %v352 = vsub.f32 %v158, %v256
    %v353 = vsub.f32 %v159, %v257
    %v354 = vmul.f32 %v258, %v258
    %v355 = vmul.f32 %v259, %v259
    %v356 = vmul.f32 %v260, %v260
    %v357 = vmul.f32 %v261, %v261
    %v358 = vmul.f32 %v262, %v262
    %v359 = vmul.f32 %v263, %v263
    %v360 = vmul.f32 %v264, %v264
    %v361 = vmul.f32 %v265, %v265
    %v362 = vmul.f32 %v266, %v266
    %v363 = vmul.f32 %v267, %v267
    %v364 = vmul.f32 %v268, %v268
    %v365 = vmul.f32 %v269, %v269
    %v366 = vmul.f32 %v270, %v270
    %v367 = vmul.f32 %v271, %v271
    %v368 = vmul.f32 %v272, %v272
    %v369 = vmul.f32 %v273, %v273
    %v370 = vmul.f32 %v274, %v274
    %v371 = vmul.f32 %v275, %v275
    %v372 = vmul.f32 %v276, %v276
    %v373 = vmul.f32 %v277, %v277
    %v374 = vmul.f32 %v278, %v278
    %v375 = vmul.f32 %v279, %v279
    %v376 = vmul.f32 %v280, %v280
    %v377 = vmul.f32 %v281, %v281
    %v378 = vmul.f32 %v282, %v282
    %v379 = vmul.f32 %v283, %v283
    %v380 = vmul.f32 %v284, %v284
    %v381 = vmul.f32 %v285, %v285
    %v382 = vmul.f32 %v286, %v286
    %v383 = vmul.f32 %v287, %v287
    %v384 = vmul.f32 %v288, %v288
    %v385 = vmul.f32 %v289, %v289
    %v386 = vmul.f32 %v290, %v290
    %v387 = vmul.f32 %v291, %v291
    %v388 = vmul.f32 %v292, %v292
    %v389 = vmul.f32 %v293, %v293
    %v390 = vmul.f32 %v294, %v294
    %v391 = vmul.f32 %v295, %v295
    %v392 = vmul.f32 %v296, %v296
    %v393 = vmul.f32 %v297, %v297
    %v394 = vmul.f32 %v298, %v298
    %v395 = vmul.f32 %v299, %v299
    %v396 = vmul.f32 %v300, %v300
    %v397 = vmul.f32 %v301, %v301
    %v398 = vmul.f32 %v302, %v302
    %v399 = vmul.f32 %v303, %v303
    %v400 = vmul.f32 %v304, %v304
    %v401 = vmul.f32 %v305, %v305
    %v402 = vmul.f32 %v306, %v306
    %v403 = vmul.f32 %v307, %v307
    %v404 = vmul.f32 %v308, %v308
    %v405 = vmul.f32 %v309, %v309
    %v406 = vmul.f32 %v310, %v310
    %v407 = vmul.f32 %v311, %v311
    %v408 = vmul.f32 %v312, %v312
    %v409 = vmul.f32 %v313, %v313
    %v410 = vmul.f32 %v314, %v314
    %v411 = vmul.f32 %v315, %v315
    %v412 = vmul.f32 %v316, %v316
    %v413 = vmul.f32 %v317, %v317
    %v414 = vmul.f32 %v318, %v318
    %v415 = vmul.f32 %v319, %v319
    %v416 = vmul.f32 %v320, %v320
    %v417 = vmul.f32 %v321, %v321
    %v418 = vmul.f32 %v322, %v322
    %v419 = vmul.f32 %v323, %v323
    %v420 = vmul.f32 %v324, %v324
    %v421 = vmul.f32 %v325, %v325
    %v422 = vmul.f32 %v326, %v326
    %v423 = vmul.f32 %v327, %v327
    %v424 = vmul.f32 %v328, %v328
    %v425 = vmul.f32 %v329, %v329
    %v426 = vmul.f32 %v330, %v330
    %v427 = vmul.f32 %v331, %v331
    %v428 = vmul.f32 %v332, %v332
    %v429 = vmul.f32 %v333, %v333
    %v430 = vmul.f32 %v334, %v334
    %v431 = vmul.f32 %v335, %v335
    %v432 = vmul.f32 %v336, %v336
    %v433 = vmul.f32 %v337, %v337
    %v434 = vmul.f32 %v338, %v338
    %v435 = vmul.f32 %v339, %v339
    %v436 = vmul.f32 %v340, %v340
    %v437 = vmul.f32 %v341, %v341
    %v438 = vmul.f32 %v342, %v342
    %v439 = vmul.f32 %v343, %v343
    %v440 = vmul.f32 %v344, %v344
    %v441 = vmul.f32 %v345, %v345
    %v442 = vmul.f32 %v346, %v346
    %v443 = vmul.f32 %v347, %v347
    %v444 = vmul.f32 %v348, %v348
    %v445 = vmul.f32 %v349, %v349
    %v446 = vmul.f32 %v350, %v350
    %v447 = vmul.f32 %v351, %v351
    %v448 = vmul.f32 %v352, %v352
    %v449 = vmul.f32 %v353, %v353
    %v450 = vadd.f32 %v354, %v357
    %v451 = vadd.f32 %v450, %v360
    %v452 = vadd.f32 %v451, %v363
    %v453 = vadd.f32 %v452, %v366
    %v454 = vadd.f32 %v453, %v369
    %v455 = vadd.f32 %v454, %v372
    %v456 = vadd.f32 %v455, %v375
    %v457 = vadd.f32 %v456, %v378
    %v458 = vadd.f32 %v457, %v381
    %v459 = vadd.f32 %v458, %v384
    %v460 = vadd.f32 %v459, %v387
    %v461 = vadd.f32 %v460, %v390
    %v462 = vadd.f32 %v461, %v393
    %v463 = vadd.f32 %v462, %v396
    %v464 = vadd.f32 %v463, %v399
    %v465 = vadd.f32 %v464, %v402
    %v466 = vadd.f32 %v465, %v405
    %v467 = vadd.f32 %v466, %v408
    %v468 = vadd.f32 %v467, %v411
    %v469 = vadd.f32 %v468, %v414
    %v470 = vadd.f32 %v469, %v417
    %v471 = vadd.f32 %v470, %v420
    %v472 = vadd.f32 %v471, %v423
    %v473 = vadd.f32 %v472, %v426
    %v474 = vadd.f32 %v473, %v429
    %v475 = vadd.f32 %v474, %v432
    %v476 = vadd.f32 %v475, %v435
    %v477 = vadd.f32 %v476, %v438
    %v478 = vadd.f32 %v477, %v441
    %v479 = vadd.f32 %v478, %v444
    %v480 = vadd.f32 %v479, %v447
    %v481 = vadd.f32 %v355, %v358
    %v482 = vadd.f32 %v481, %v361
    %v483 = vadd.f32 %v482, %v364
    %v484 = vadd.f32 %v483, %v367
    %v485 = vadd.f32 %v484, %v370
    %v486 = vadd.f32 %v485, %v373
    %v487 = vadd.f32 %v486, %v376
    %v488 = vadd.f32 %v487, %v379
    %v489 = vadd.f32 %v488, %v382
    %v490 = vadd.f32 %v489, %v385
    %v491 = vadd.f32 %v490, %v388
    %v492 = vadd.f32 %v491, %v391
    %v493 = vadd.f32 %v492, %v394
    %v494 = vadd.f32 %v493, %v397
    %v495 = vadd.f32 %v494, %v400
    %v496 = vadd.f32 %v495, %v403
    %v497 = vadd.f32 %v496, %v406
    %v498 = vadd.f32 %v497, %v409
    %v499 = vadd.f32 %v498, %v412
    %v500 = vadd.f32 %v499, %v415
    %v501 = vadd.f32 %v500, %v418
    %v502 = vadd.f32 %v501, %v421
    %v503 = vadd.f32 %v502, %v424
    %v504 = vadd.f32 %v503, %v427
    %v505 = vadd.f32 %v504, %v430
    %v506 = vadd.f32 %v505, %v433
    %v507 = vadd.f32 %v506, %v436
    %v508 = vadd.f32 %v507, %v439
    %v509 = vadd.f32 %v508, %v442
    %v510 = vadd.f32 %v509, %v445
    %v511 = vadd.f32 %v510, %v448
    %v512 = vadd.f32 %v356, %v359
    %v513 = vadd.f32 %v512, %v362
    %v514 = vadd.f32 %v513, %v365
    %v515 = vadd.f32 %v514, %v368
    %v516 = vadd.f32 %v515, %v371
    %v517 = vadd.f32 %v516, %v374
    %v518 = vadd.f32 %v517, %v377
    %v519 = vadd.f32 %v518, %v380
    %v520 = vadd.f32 %v519, %v383
    %v521 = vadd.f32 %v520, %v386
    %v522 = vadd.f32 %v521, %v389
    %v523 = vadd.f32 %v522, %v392
    %v524 = vadd.f32 %v523, %v395
    %v525 = vadd.f32 %v524, %v398
    %v526 = vadd.f32 %v525, %v401
    %v527 = vadd.f32 %v526, %v404
    %v528 = vadd.f32 %v527, %v407
    %v529 = vadd.f32 %v528, %v410
    %v530 = vadd.f32 %v529, %v413
    %v531 = vadd.f32 %v530, %v416
    %v532 = vadd.f32 %v531, %v419
    %v533 = vadd.f32 %v532, %v422
    %v534 = vadd.f32 %v533, %v425
    %v535 = vadd.f32 %v534, %v428
    %v536 = vadd.f32 %v535, %v431
    %v537 = vadd.f32 %v536, %v434
    %v538 = vadd.f32 %v537, %v437
    %v539 = vadd.f32 %v538, %v440
    %v540 = vadd.f32 %v539, %v443
    %v541 = vadd.f32 %v540, %v446
    %v542 = vadd.f32 %v541, %v449
    %v543 = vld [vmem:[#allocation7] sm:$0xff]
    %v544 = vld [vmem:[#allocation7 + $0x8] sm:$0xff]
    %v545 = vld [vmem:[#allocation7 + $0x10] sm:$0xff]
    %v546 = vadd.f32 %v543, %v480
    %v547 = vadd.f32 %v544, %v511
    %v548 = vadd.f32 %v545, %v542
    %549 = vst [vmem:[#allocation7] sm:$0xff] %v546
    %550 = vst [vmem:[#allocation7 + $0x8] sm:$0xff] %v547
    %551 = vst [vmem:[#allocation7 + $0x10] sm:$0xff] %v548
    // Predicated region
    $region22: #{tpu_custom_call.1} parent=1 // pred_check
      _
    $region23: #{tpu_custom_call.1} parent=1 // pred_check_branch
      %553 = sbr.rel (0) target = $region25
    $region24: #{tpu_custom_call.1} parent=1 // pred_region
      %s555 = ssub.s32 384, 384
      %556 = vsyncadd [#allocation4], %s555
      %s558 = sshll.u32 [#allocation7], 4
      %s559 = int_to_ptr.vmem [resolvable:$true] %s558
      %561 = dma.vmem_to_hbm [thread:$0]  %s559, 384, %s2, [#allocation4]
    $region25: #{tpu_custom_call.1} parent=1 // pred_fallthru
      _
    // Predicated region
    $region26: #{tpu_custom_call.1} parent=1 // pred_check
      _
    $region27: #{tpu_custom_call.1} parent=1 // pred_check_branch
      %563 = sbr.rel (0) target = $region29
    $region28: #{tpu_custom_call.1} parent=1 // pred_region
      %564 = dma.done [#allocation4], 384
    $region29: #{tpu_custom_call.1} parent=1 // pred_fallthru
      _
    %565 = vsyncpa [#allocation3], 1
    %566 = vsyncpa [#allocation6], 1
    %567 = vsyncpa [#allocation4], 1

</llo_original>
